<compile_context>
chip_gen: v6e
topology: v6e:2x2x1
jax: 0.10.0
libtpu: 0.0.40
codegen_flags: <defaults>
</compile_context>

<pallas_src>
import functools

import jax
import jax.numpy as jnp
from jax.experimental import pallas as pl
from jax.experimental.pallas import tpu as pltpu

_LANE = 128
_SUBLANE = 8


def _round_up(n, m):
    return ((n + m - 1) // m) * m


def _encoder_kernel(x_ref, w1_ref, b1_ref, w2_ref, b2_ref, alpha_ref, out_ref):
    # x:  (TB, D_in)  f32
    # w1: (D_in, Hp)  f32   b1: (1, Hp) f32     (Hp = 2L padded to 128)
    # w2: (Hp, L)     f32   b2: (1, L)  f32
    # alpha: (1,) f32 in SMEM (PReLU default: single shared slope)
    x = x_ref[...]

    # Linear 1 on the MXU, f32 accumulation.
    h = jnp.dot(x, w1_ref[...], preferred_element_type=jnp.float32) + b1_ref[...]

    # PReLU on the f32 accumulator (VPU; scalar slope from SMEM).
    a = alpha_ref[0]
    h = jnp.where(h >= 0, h, a * h)

    # Linear 2 on the MXU (f32), bias add, direct (tb, L) store.
    y = jnp.dot(h, w2_ref[...], preferred_element_type=jnp.float32) + b2_ref[...]
    out_ref[...] = y.astype(out_ref.dtype)


def prepare_params(w1, b1, w2, b2, alpha):
    """One-time packing of PyTorch-layout params.

    (out, in) f32 weights -> transposed to (in, out). The hidden dim (2L) is
    zero-padded to a multiple of 128 (numerically inert: padded hidden lanes
    stay exactly 0 through PReLU and the zero rows of w2). The final output
    dim L is NOT padded so the kernel stores exactly L columns. Done once at
    setup, not per forward call.
    """
    H, D_in = w1.shape          # H = 2 * latent_size
    L = w2.shape[0]             # latent_size
    Hp = _round_up(H, _LANE)

    w1_t = jnp.zeros((D_in, Hp), jnp.float32).at[:, :H].set(
        jnp.asarray(w1, jnp.float32).T)
    b1_p = jnp.zeros((1, Hp), jnp.float32).at[:, :H].set(
        jnp.asarray(b1, jnp.float32)[None, :])
    w2_t = jnp.zeros((Hp, L), jnp.float32).at[:H, :].set(
        jnp.asarray(w2, jnp.float32).T)
    b2_p = jnp.asarray(b2, jnp.float32).reshape(1, L)
    alpha_s = jnp.asarray(alpha, jnp.float32).reshape(1)

    return dict(w1=w1_t, b1=b1_p, w2=w2_t, b2=b2_p, alpha=alpha_s,
                d_in=D_in, h=H, l=L)


def encoder_forward(params, x):
    """Fused Linear -> PReLU -> Linear.  x: (B, D_in) float32 -> (B, L) float32."""
    B, D_in = x.shape
    assert D_in == params["d_in"], (D_in, params["d_in"])
    Hp = params["w1"].shape[1]
    L = params["l"]

    # ---- batch tile selection -------------------------------------------
    # Resident (constant-index_map) weights/biases, all f32.
    resident = 4 * (params["w1"].size + params["b1"].size
                    + params["w2"].size + params["b2"].size)

    def tile_bytes(t):  # double-buffered f32 x tile + double-buffered f32 out tile
        return 2 * (t * D_in * 4) + 2 * (t * L * 4)

    budget = 24 * 1024 * 1024
    cap = 2048                                   # large tiles amortize step overhead
    tb = min(cap, _round_up(B, _SUBLANE))
    while tb > _SUBLANE and resident + tile_bytes(tb) > budget:
        tb //= 2
    tb = _round_up(max(tb, _SUBLANE), _SUBLANE)

    # Keep >=2 grid steps when the batch is big enough, so the "parallel" batch
    # axis can shard across both TensorCores on v7x.
    if B > 4 * _SUBLANE and pl.cdiv(B, tb) < 2:
        tb = _round_up(pl.cdiv(B, 2), _SUBLANE)

    grid = (pl.cdiv(B, tb),)                     # partial last tile handled by Pallas

    # Tight VMEM request: resident weights + tiles + small slack.
    vmem_limit = int(min(max(resident + tile_bytes(tb) + (2 << 20), 4 << 20),
                         32 << 20))

    out = pl.pallas_call(
        _encoder_kernel,
        out_shape=jax.ShapeDtypeStruct((B, L), jnp.float32),
        grid=grid,
        in_specs=[
            pl.BlockSpec((tb, D_in), lambda i: (i, 0)),       # x tile (pipelined)
            pl.BlockSpec((D_in, Hp), lambda i: (0, 0)),       # w1 (resident)
            pl.BlockSpec((1, Hp), lambda i: (0, 0)),          # b1 (resident)
            pl.BlockSpec((Hp, L), lambda i: (0, 0)),          # w2 (resident)
            pl.BlockSpec((1, L), lambda i: (0, 0)),           # b2 (resident)
            pl.BlockSpec(memory_space=pltpu.MemorySpace.SMEM),  # alpha (scalar)
        ],
        out_specs=pl.BlockSpec((tb, L), lambda i: (i, 0)),
        compiler_params=pltpu.CompilerParams(
            dimension_semantics=("parallel",),
            vmem_limit_bytes=vmem_limit,
        ),
    )(x, params["w1"], params["b1"], params["w2"], params["b2"], params["alpha"])

    return out


def init_params(key, in_features, latent_size):
    """Deterministic parameter init matching nn.Linear / nn.PReLU shapes."""
    hidden = latent_size * 2
    k1, k2, k3, k4 = jax.random.split(key, 4)
    lim1 = 1.0 / jnp.sqrt(in_features)
    lim2 = 1.0 / jnp.sqrt(hidden)
    w1 = jax.random.uniform(k1, (hidden, in_features), jnp.float32, -lim1, lim1)
    b1 = jax.random.uniform(k2, (hidden,), jnp.float32, -lim1, lim1)
    w2 = jax.random.uniform(k3, (latent_size, hidden), jnp.float32, -lim2, lim2)
    b2 = jax.random.uniform(k4, (latent_size,), jnp.float32, -lim2, lim2)
    alpha = jnp.float32(0.25)  # PReLU default init
    return w1, b1, w2, b2, alpha


if __name__ == "__main__":
    batch = 8
    in_features = 32      # LazyLinear infers this from the first input
    latent_size = 16

    key = jax.random.PRNGKey(0)
    kx, kp = jax.random.split(key)
    x = jax.random.normal(kx, (batch, in_features), jnp.float32)
    w1, b1, w2, b2, alpha = init_params(kp, in_features, latent_size)

    params = prepare_params(w1, b1, w2, b2, alpha)     # one-time packing
    fwd = jax.jit(functools.partial(encoder_forward, params))

    out = jax.block_until_ready(fwd(x))

    # Reference in plain f32 JAX (same math as PyTorch Linear -> PReLU -> Linear).
    h_ref = x @ w1.T + b1
    h_ref = jnp.where(h_ref >= 0, h_ref, alpha * h_ref)
    y_ref = h_ref @ w2.T + b2

    assert out.shape == (batch, latent_size)
    assert jnp.allclose(out, y_ref, atol=2e-2, rtol=2e-2), float(
        jnp.max(jnp.abs(out - y_ref)))

    print("KERNEL_OK")
</pallas_src>

<mosaic_0001>
module attributes {stable_mosaic.version = 11 : i64} {
  func.func @_encoder_kernel(%arg0: i32, %arg1: memref<8x32xf32, #tpu.memory_space<vmem>>, %arg2: memref<32x128xf32, #tpu.memory_space<vmem>>, %arg3: memref<1x128xf32, #tpu.memory_space<vmem>>, %arg4: memref<128x16xf32, #tpu.memory_space<vmem>>, %arg5: memref<1x16xf32, #tpu.memory_space<vmem>>, %arg6: memref<1xf32, #tpu.memory_space<smem>>, %arg7: memref<8x16xf32, #tpu.memory_space<vmem>>) attributes {dimension_semantics = [#tpu.dimension_semantics<parallel>], iteration_bounds = array<i64: 1>, scalar_prefetch = 0 : i64, scratch_operands = 0 : i64, tpu.core_type = #tpu.core_type<tc>, window_params = [{transform_indices = @transform_0, window_bounds = array<i64: 8, 32>}, {pipeline_mode = #tpu.pipeline_mode<synchronous>, transform_indices = @transform_1, window_bounds = array<i64: 32, 128>}, {pipeline_mode = #tpu.pipeline_mode<synchronous>, transform_indices = @transform_2, window_bounds = array<i64: 1, 128>}, {pipeline_mode = #tpu.pipeline_mode<synchronous>, transform_indices = @transform_3, window_bounds = array<i64: 128, 16>}, {pipeline_mode = #tpu.pipeline_mode<synchronous>, transform_indices = @transform_4, window_bounds = array<i64: 1, 16>}, {transform_indices = @transform_5, window_bounds = array<i64: 1>}, {transform_indices = @transform_6, window_bounds = array<i64: 8, 16>}]} {
    %c0 = arith.constant 0 : index
    %c0_0 = arith.constant 0 : index
    %0 = vector.load %arg1[%c0, %c0_0] : memref<8x32xf32, #tpu.memory_space<vmem>>, vector<8x32xf32>
    %c0_1 = arith.constant 0 : index
    %c0_2 = arith.constant 0 : index
    %1 = vector.load %arg2[%c0_1, %c0_2] : memref<32x128xf32, #tpu.memory_space<vmem>>, vector<32x128xf32>
    %cst = arith.constant dense<0.000000e+00> : vector<8x128xf32>
    %2 = tpu.matmul %0, %1, %cst {dimension_numbers = #tpu.dot_dimension_numbers<[1], [0], [0], [1], [0, 0, 1, 1], [], []>} : vector<8x32xf32>, vector<32x128xf32>, vector<8x128xf32> -> vector<8x128xf32>
    %c0_3 = arith.constant 0 : index
    %c0_4 = arith.constant 0 : index
    %3 = vector.load %arg3[%c0_3, %c0_4] : memref<1x128xf32, #tpu.memory_space<vmem>>, vector<1x128xf32>
    %4 = vector.broadcast %3 : vector<1x128xf32> to vector<8x128xf32>
    %5 = arith.addf %2, %4 : vector<8x128xf32>
    %c0_5 = arith.constant 0 : index
    %6 = memref.load %arg6[%c0_5] : memref<1xf32, #tpu.memory_space<smem>>
    %cst_6 = arith.constant 0.000000e+00 : f32
    %7 = vector.broadcast %cst_6 : f32 to vector<8x128xf32>
    %8 = arith.cmpf oge, %5, %7 : vector<8x128xf32>
    %9 = vector.broadcast %6 : f32 to vector<8x128xf32>
    %10 = arith.mulf %9, %5 : vector<8x128xf32>
    %11 = arith.select %8, %5, %10 : vector<8x128xi1>, vector<8x128xf32>
    %c0_7 = arith.constant 0 : index
    %c0_8 = arith.constant 0 : index
    %12 = vector.load %arg4[%c0_7, %c0_8] : memref<128x16xf32, #tpu.memory_space<vmem>>, vector<128x16xf32>
    %cst_9 = arith.constant dense<0.000000e+00> : vector<8x16xf32>
    %13 = tpu.matmul %11, %12, %cst_9 {dimension_numbers = #tpu.dot_dimension_numbers<[1], [0], [0], [1], [0, 0, 1, 1], [], []>} : vector<8x128xf32>, vector<128x16xf32>, vector<8x16xf32> -> vector<8x16xf32>
    %c0_10 = arith.constant 0 : index
    %c0_11 = arith.constant 0 : index
    %14 = vector.load %arg5[%c0_10, %c0_11] : memref<1x16xf32, #tpu.memory_space<vmem>>, vector<1x16xf32>
    %15 = vector.broadcast %14 : vector<1x16xf32> to vector<8x16xf32>
    %16 = arith.addf %13, %15 : vector<8x16xf32>
    %c0_12 = arith.constant 0 : index
    %c0_13 = arith.constant 0 : index
    %17 = vector.load %arg7[%c0_12, %c0_13] : memref<8x16xf32, #tpu.memory_space<vmem>>, vector<8x16xf32>
    tpu.vector_store %arg7[%c0_12, %c0_13], %16 {strides = array<i32>} : memref<8x16xf32, #tpu.memory_space<vmem>>, vector<8x16xf32>,
    return
  }
  func.func @transform_0(%arg0: i32) -> (i32, i32) {
    %c0_i32 = arith.constant 0 : i32
    %c0_i32_0 = arith.constant 0 : i32
    return %arg0, %c0_i32 : i32, i32
  }
  func.func @transform_1(%arg0: i32) -> (i32, i32) {
    %c0_i32 = arith.constant 0 : i32
    %c0_i32_0 = arith.constant 0 : i32
    %c0_i32_1 = arith.constant 0 : i32
    return %c0_i32, %c0_i32_0 : i32, i32
  }
  func.func @transform_2(%arg0: i32) -> (i32, i32) {
    %c0_i32 = arith.constant 0 : i32
    %c0_i32_0 = arith.constant 0 : i32
    %c0_i32_1 = arith.constant 0 : i32
    return %c0_i32, %c0_i32_0 : i32, i32
  }
  func.func @transform_3(%arg0: i32) -> (i32, i32) {
    %c0_i32 = arith.constant 0 : i32
    %c0_i32_0 = arith.constant 0 : i32
    %c0_i32_1 = arith.constant 0 : i32
    return %c0_i32, %c0_i32_0 : i32, i32
  }
  func.func @transform_4(%arg0: i32) -> (i32, i32) {
    %c0_i32 = arith.constant 0 : i32
    %c0_i32_0 = arith.constant 0 : i32
    %c0_i32_1 = arith.constant 0 : i32
    return %c0_i32, %c0_i32_0 : i32, i32
  }
  func.func @transform_5(%arg0: i32) -> i32 {
    %c0_i32 = arith.constant 0 : i32
    %c0_i32_0 = arith.constant 0 : i32
    return %c0_i32 : i32
  }
  func.func @transform_6(%arg0: i32) -> (i32, i32) {
    %c0_i32 = arith.constant 0 : i32
    %c0_i32_0 = arith.constant 0 : i32
    return %arg0, %c0_i32 : i32, i32
  }
}

</mosaic_0001>

<llo_original>
// kernel: encoder_forward.1
$region0: #{encoder_forward.1}
  #allocation0 [shape = 'u32[]', space=smem, size = 0x4, offset = 0x4, fixed_abs, tag = 'smem constant byte address 0x4 - core index']
  #allocation1 [shape = 'u32[144,128]{1,0:T(1,128)}', space=vmem, size = 0x12000, scoped, tag = 'internal scratch']
  #allocation2 [shape = 'f32[1]{0:T(128)S(6)}', space=smem, size = 0x200, scoped, tag = 'scoped memory for encoder_forward.1']
  %s0 = inlined_call_operand.hbm [shape: f32[8,32], index: 0, kind: input, shape index: {}]
  %s1 = inlined_call_operand.hbm [shape: f32[32,128], index: 1, kind: input, shape index: {}]
  %s2 = inlined_call_operand.vmem [shape: f32[1,128], index: 2, kind: input, shape index: {}]
  %s3 = inlined_call_operand.hbm [shape: f32[128,16], index: 3, kind: input, shape index: {}]
  %s4 = inlined_call_operand.vmem [shape: f32[1,16], index: 4, kind: input, shape index: {}]
  %s5 = inlined_call_operand.<no memory space> [shape: f32[1], index: 5, kind: input, shape index: {}]
  %s6 = inlined_call_operand.hbm [shape: f32[8,16], index: 6, kind: output, shape index: {}]
  %s7 = sld [smem:[#allocation0]]
  $region46: #{encoder_forward.1} parent=0
    _
  %s9 = ssub.s32 1, %s7
  %s10 = scalar_select 0, %s9, %s7
  %11 = sst [smem:[#allocation2]] %s5
  $region1: #{encoder_forward.1} parent=0
    #allocation3 [shape = 'u8[4096]{0}', space=vmem, size = 0x1000, scoped, tag = 'input window, operand 0, single buffered']
    #allocation4 [shape = 's32[1]{0}', space=sflag, size = 0x4, scoped, tag = 'scoped memory for encoder_forward.1']
    #allocation5 [shape = 's32[1]{0}', space=sflag, size = 0x4, scoped, tag = 'scoped memory for encoder_forward.1']
    #allocation6 [shape = 'u8[16384]{0}', space=vmem, size = 0x4000, scoped, tag = 'input window, operand 1, single buffered']
    #allocation7 [shape = 's32[1]{0}', space=sflag, size = 0x4, scoped, tag = 'scoped memory for encoder_forward.1']
    #allocation8 [shape = 'u8[65536]{0}', space=vmem, size = 0x10000, scoped, tag = 'input window, operand 3, single buffered']
    #allocation9 [shape = 'u8[4096]{0}', space=vmem, size = 0x1000, scoped, tag = 'output window, operand 0, single buffered']
    %12 = vsyncpa [#allocation4], 0
    %13 = vsyncpa [#allocation7], 0
    %14 = vsyncpa [#allocation5], 0
    // Predicated region
    $region2: #{encoder_forward.1} parent=1 // pred_check
      _
    $region3: #{encoder_forward.1} parent=1 // pred_check_branch
      %16 = sbr.rel (0) target = $region5
    $region4: #{encoder_forward.1} parent=1 // pred_region
      %s18 = ssub.s32 128, 128
      %19 = vsyncadd [#allocation4], %s18
      %s21 = sshll.u32 [#allocation3], 4
      %s22 = int_to_ptr.vmem [resolvable:$true] %s21
      %24 = dma.hbm_to_vmem [thread:$0]  %s0, 128, %s22, [#allocation4]
    $region5: #{encoder_forward.1} parent=1 // pred_fallthru
      _
    // Predicated region
    $region6: #{encoder_forward.1} parent=1 // pred_check
      _
    $region7: #{encoder_forward.1} parent=1 // pred_check_branch
      %26 = sbr.rel (0) target = $region9
    $region8: #{encoder_forward.1} parent=1 // pred_region
      %s28 = ssub.s32 512, 512
      %29 = vsyncadd [#allocation7], %s28
      %s30 = sshll.u32 [#allocation6], 4
      %s31 = int_to_ptr.vmem [resolvable:$true] %s30
      %36 = dma.hbm_to_vmem [thread:$0]  %s1, 512, %s31, [#allocation7], 128, 128, 8
    $region9: #{encoder_forward.1} parent=1 // pred_fallthru
      _
    // Predicated region
    $region10: #{encoder_forward.1} parent=1 // pred_check
      _
    $region11: #{encoder_forward.1} parent=1 // pred_check_branch
      %38 = sbr.rel (0) target = $region13
    $region12: #{encoder_forward.1} parent=1 // pred_region
      _
    $region13: #{encoder_forward.1} parent=1 // pred_fallthru
      _
    // Predicated region
    $region14: #{encoder_forward.1} parent=1 // pred_check
      _
    $region15: #{encoder_forward.1} parent=1 // pred_check_branch
      %40 = sbr.rel (0) target = $region17
    $region16: #{encoder_forward.1} parent=1 // pred_region
      %s42 = ssub.s32 2048, 2048
      %43 = vsyncadd [#allocation7], %s42
      %s44 = sshll.u32 [#allocation8], 4
      %s45 = int_to_ptr.vmem [resolvable:$true] %s44
      %50 = dma.hbm_to_vmem [thread:$0]  %s3, 2048, %s45, [#allocation7], 128, 128, 8
    $region17: #{encoder_forward.1} parent=1 // pred_fallthru
      _
    // Predicated region
    $region18: #{encoder_forward.1} parent=1 // pred_check
      _
    $region19: #{encoder_forward.1} parent=1 // pred_check_branch
      %52 = sbr.rel (0) target = $region21
    $region20: #{encoder_forward.1} parent=1 // pred_region
      _
    $region21: #{encoder_forward.1} parent=1 // pred_fallthru
      _
    // Predicated region
    $region22: #{encoder_forward.1} parent=1 // pred_check
      _
    $region23: #{encoder_forward.1} parent=1 // pred_check_branch
      %54 = sbr.rel (0) target = $region25
    $region24: #{encoder_forward.1} parent=1 // pred_region
      _
    $region25: #{encoder_forward.1} parent=1 // pred_fallthru
      _
    // Predicated region
    $region26: #{encoder_forward.1} parent=1 // pred_check
      _
    $region27: #{encoder_forward.1} parent=1 // pred_check_branch
      %56 = sbr.rel (0) target = $region29
    $region28: #{encoder_forward.1} parent=1 // pred_region
      %57 = dma.done [#allocation4], 128
    $region29: #{encoder_forward.1} parent=1 // pred_fallthru
      _
    // Predicated region
    $region30: #{encoder_forward.1} parent=1 // pred_check
      _
    $region31: #{encoder_forward.1} parent=1 // pred_check_branch
      %59 = sbr.rel (0) target = $region33
    $region32: #{encoder_forward.1} parent=1 // pred_region
      %60 = dma.done [#allocation7], 512
    $region33: #{encoder_forward.1} parent=1 // pred_fallthru
      _
    // Predicated region
    $region34: #{encoder_forward.1} parent=1 // pred_check
      _
    $region35: #{encoder_forward.1} parent=1 // pred_check_branch
      %62 = sbr.rel (0) target = $region37
    $region36: #{encoder_forward.1} parent=1 // pred_region
      %63 = dma.done [#allocation7], 2048
    $region37: #{encoder_forward.1} parent=1 // pred_fallthru
      _
    %v64 = vld [vmem:[#allocation3] sm:$0xff]
    %v65 = vld [vmem:[#allocation6] sm:$0xff]
    %v66 = vld [vmem:[#allocation6 + $0x8] sm:$0xff]
    %v67 = vld [vmem:[#allocation6 + $0x10] sm:$0xff]
    %v68 = vld [vmem:[#allocation6 + $0x18] sm:$0xff]
    %v69 = vld [vmem:[%s2] sm:$0x1]
    %v71 = vlaneseq
    %v72 = vshrl.u32 %v71, 7
    %v73 = vsub.s32 0, %v72
    %v74 = vrot.slane %v69, %v73
    %vm76 = vcmask 261120
    %v78 = vsel %vm76, %v64, 0
    %80 = vmatprep.subr.mxu0 0.0
    %81 = vmatpush1.msra.mxu0 0.0
    %82 = vmatprep.subr.mxu0 0.0
    %83 = vmatpush1.msra.mxu0 0.0
    %84 = vmatprep.subr.mxu0 0.0
    %85 = vmatpush1.msra.mxu0 0.0
    %86 = vmatprep.subr.mxu0 0.0
    %87 = vmatpush1.msra.mxu0 0.0
    %88 = vmatprep.subr.mxu0 0.0
    %89 = vmatpush1.msra.mxu0 0.0
    %90 = vmatprep.subr.mxu0 0.0
    %91 = vmatpush1.msra.mxu0 0.0
    %92 = vmatprep.subr.mxu0 0.0
    %93 = vmatpush1.msra.mxu0 0.0
    %94 = vmatprep.subr.mxu0 0.0
    %95 = vmatpush1.msra.mxu0 0.0
    %96 = vmatprep.subr.mxu0 0.0
    %97 = vmatpush1.msra.mxu0 0.0
    %98 = vmatprep.subr.mxu0 0.0
    %99 = vmatpush1.msra.mxu0 0.0
    %100 = vmatprep.subr.mxu0 0.0
    %101 = vmatpush1.msra.mxu0 0.0
    %102 = vmatprep.subr.mxu0 0.0
    %103 = vmatpush1.msra.mxu0 0.0
    %104 = vmatprep.subr.mxu0 0.0
    %105 = vmatpush1.msra.mxu0 %v68
    %106 = vmatprep.subr.mxu0 0.0
    %107 = vmatpush1.msra.mxu0 %v67
    %108 = vmatprep.subr.mxu0 0.0
    %109 = vmatpush1.msra.mxu0 %v66
    %110 = vmatprep.subr.mxu0 0.0
    %111 = vmatpush1.msra.mxu0 %v65
    %112 = vmatprep.subr.mxu0 0.0
    %113 = vmatpush2.msra.mxu0 0.0
    %114 = vmatprep.subr.mxu0 0.0
    %115 = vmatpush2.msra.mxu0 0.0
    %116 = vmatprep.subr.mxu0 0.0
    %117 = vmatpush2.msra.mxu0 0.0
    %118 = vmatprep.subr.mxu0 0.0
    %119 = vmatpush2.msra.mxu0 0.0
    %120 = vmatprep.subr.mxu0 0.0
    %121 = vmatpush2.msra.mxu0 0.0
    %122 = vmatprep.subr.mxu0 0.0
    %123 = vmatpush2.msra.mxu0 0.0
    %124 = vmatprep.subr.mxu0 0.0
    %125 = vmatpush2.msra.mxu0 0.0
    %126 = vmatprep.subr.mxu0 0.0
    %127 = vmatpush2.msra.mxu0 0.0
    %128 = vmatprep.subr.mxu0 0.0
    %129 = vmatpush2.msra.mxu0 0.0
    %130 = vmatprep.subr.mxu0 0.0
    %131 = vmatpush2.msra.mxu0 0.0
    %132 = vmatprep.subr.mxu0 0.0
    %133 = vmatpush2.msra.mxu0 0.0
    %134 = vmatprep.subr.mxu0 0.0
    %135 = vmatpush2.msra.mxu0 0.0
    %136 = vmatprep.subr.mxu0 0.0
    %137 = vmatpush2.msra.mxu0 0.0
    %138 = vmatprep.subr.mxu0 0.0
    %139 = vmatpush2.msra.mxu0 0.0
    %140 = vmatprep.subr.mxu0 0.0
    %141 = vmatpush2.msra.mxu0 0.0
    %142 = vmatprep.subr.mxu0 0.0
    %143 = vmatpush2.msra.mxu0 0.0
    %144 = vmatprep.mubr.f32.mxu0 0.0
    %145 = vmatmul.mubr.f32.gmra.mxu0 %v78
    %v146 = vpop.f32.mrf.mxu0
    %v147 = vadd.f32 %v74, %v146
    %v148 = vpop.f32.mrf.mxu0
    %149 = vdwg.mxu0
    %s150 = sld [smem:[#allocation2]]
    %vm151 = vcmp.ge.f32.partialorder %v147, 0.0
    %v152 = vstv %s150
    %v153 = vmul.f32 %v152, %v147
    %v154 = vsel %vm151, %v147, %v153
    %v155 = vld [vmem:[#allocation8] sm:$0xff]
    %v156 = vld [vmem:[#allocation8 + $0x8] sm:$0xff]
    %v157 = vld [vmem:[#allocation8 + $0x10] sm:$0xff]
    %v158 = vld [vmem:[#allocation8 + $0x18] sm:$0xff]
    %v159 = vld [vmem:[#allocation8 + $0x20] sm:$0xff]
    %v160 = vld [vmem:[#allocation8 + $0x28] sm:$0xff]
    %v161 = vld [vmem:[#allocation8 + $0x30] sm:$0xff]
    %v162 = vld [vmem:[#allocation8 + $0x38] sm:$0xff]
    %v163 = vld [vmem:[#allocation8 + $0x40] sm:$0xff]
    %v164 = vld [vmem:[#allocation8 + $0x48] sm:$0xff]
    %v165 = vld [vmem:[#allocation8 + $0x50] sm:$0xff]
    %v166 = vld [vmem:[#allocation8 + $0x58] sm:$0xff]
    %v167 = vld [vmem:[#allocation8 + $0x60] sm:$0xff]
    %v168 = vld [vmem:[#allocation8 + $0x68] sm:$0xff]
    %v169 = vld [vmem:[#allocation8 + $0x70] sm:$0xff]
    %v170 = vld [vmem:[#allocation8 + $0x78] sm:$0xff]
    %v171 = vld [vmem:[%s4] sm:$0x1]
    %v173 = vlaneseq
    %v174 = vshrl.u32 %v173, 7
    %v175 = vsub.s32 0, %v174
    %v176 = vrot.slane %v171, %v175
    %178 = vmatprep.subr.mxu0 0.0
    %179 = vmatpush1.msra.mxu0 %v170
    %180 = vmatprep.subr.mxu0 0.0
    %181 = vmatpush1.msra.mxu0 %v169
    %182 = vmatprep.subr.mxu0 0.0
    %183 = vmatpush1.msra.mxu0 %v168
    %184 = vmatprep.subr.mxu0 0.0
    %185 = vmatpush1.msra.mxu0 %v167
    %186 = vmatprep.subr.mxu0 0.0
    %187 = vmatpush1.msra.mxu0 %v166
    %188 = vmatprep.subr.mxu0 0.0
    %189 = vmatpush1.msra.mxu0 %v165
    %190 = vmatprep.subr.mxu0 0.0
    %191 = vmatpush1.msra.mxu0 %v164
    %192 = vmatprep.subr.mxu0 0.0
    %193 = vmatpush1.msra.mxu0 %v163
    %194 = vmatprep.subr.mxu0 0.0
    %195 = vmatpush1.msra.mxu0 %v162
    %196 = vmatprep.subr.mxu0 0.0
    %197 = vmatpush1.msra.mxu0 %v161
    %198 = vmatprep.subr.mxu0 0.0
    %199 = vmatpush1.msra.mxu0 %v160
    %200 = vmatprep.subr.mxu0 0.0
    %201 = vmatpush1.msra.mxu0 %v159
    %202 = vmatprep.subr.mxu0 0.0
    %203 = vmatpush1.msra.mxu0 %v158
    %204 = vmatprep.subr.mxu0 0.0
    %205 = vmatpush1.msra.mxu0 %v157
    %206 = vmatprep.subr.mxu0 0.0
    %207 = vmatpush1.msra.mxu0 %v156
    %208 = vmatprep.subr.mxu0 0.0
    %209 = vmatpush1.msra.mxu0 %v155
    %210 = vmatprep.subr.mxu0 0.0
    %211 = vmatpush2.msra.mxu0 0.0
    %212 = vmatprep.subr.mxu0 0.0
    %213 = vmatpush2.msra.mxu0 0.0
    %214 = vmatprep.subr.mxu0 0.0
    %215 = vmatpush2.msra.mxu0 0.0
    %216 = vmatprep.subr.mxu0 0.0
    %217 = vmatpush2.msra.mxu0 0.0
    %218 = vmatprep.subr.mxu0 0.0
    %219 = vmatpush2.msra.mxu0 0.0
    %220 = vmatprep.subr.mxu0 0.0
    %221 = vmatpush2.msra.mxu0 0.0
    %222 = vmatprep.subr.mxu0 0.0
    %223 = vmatpush2.msra.mxu0 0.0
    %224 = vmatprep.subr.mxu0 0.0
    %225 = vmatpush2.msra.mxu0 0.0
    %226 = vmatprep.subr.mxu0 0.0
    %227 = vmatpush2.msra.mxu0 0.0
    %228 = vmatprep.subr.mxu0 0.0
    %229 = vmatpush2.msra.mxu0 0.0
    %230 = vmatprep.subr.mxu0 0.0
    %231 = vmatpush2.msra.mxu0 0.0
    %232 = vmatprep.subr.mxu0 0.0
    %233 = vmatpush2.msra.mxu0 0.0
    %234 = vmatprep.subr.mxu0 0.0
    %235 = vmatpush2.msra.mxu0 0.0
    %236 = vmatprep.subr.mxu0 0.0
    %237 = vmatpush2.msra.mxu0 0.0
    %238 = vmatprep.subr.mxu0 0.0
    %239 = vmatpush2.msra.mxu0 0.0
    %240 = vmatprep.subr.mxu0 0.0
    %241 = vmatpush2.msra.mxu0 0.0
    %242 = vmatprep.mubr.f32.mxu0 0.0
    %243 = vmatmul.mubr.f32.gmra.mxu0 %v154
    %v244 = vpop.f32.mrf.mxu0
    %v245 = vadd.f32 %v176, %v244
    %v246 = vpop.f32.mrf.mxu0
    %247 = vdwg.mxu0
    %vm248 = vcmask 130048
    %249 = vst.msk [vmem:[#allocation9] sm:$0xff] %vm248, %v245
    // Predicated region
    $region38: #{encoder_forward.1} parent=1 // pred_check
      _
    $region39: #{encoder_forward.1} parent=1 // pred_check_branch
      %251 = sbr.rel (0) target = $region41
    $region40: #{encoder_forward.1} parent=1 // pred_region
      %s253 = ssub.s32 128, 128
      %254 = vsyncadd [#allocation5], %s253
      %s256 = sshll.u32 [#allocation9], 4
      %s257 = int_to_ptr.vmem [resolvable:$true] %s256
      %259 = dma.vmem_to_hbm [thread:$0]  %s257, 128, %s6, [#allocation5]
    $region41: #{encoder_forward.1} parent=1 // pred_fallthru
      _
    // Predicated region
    $region42: #{encoder_forward.1} parent=1 // pred_check
      _
    $region43: #{encoder_forward.1} parent=1 // pred_check_branch
      %261 = sbr.rel (0) target = $region45
    $region44: #{encoder_forward.1} parent=1 // pred_region
      %262 = dma.done [#allocation5], 128
    $region45: #{encoder_forward.1} parent=1 // pred_fallthru
      _
    %263 = vsyncpa [#allocation4], 1
    %264 = vsyncpa [#allocation7], 1
    %265 = vsyncpa [#allocation5], 1

</llo_original>
